<compile_context>
chip_gen: v7x
topology: tpu7x:2x2x1
jax: 0.10.0
libtpu: 0.0.40
codegen_flags: <defaults>
</compile_context>

<pallas_src>
import functools

import jax
import jax.numpy as jnp
from jax.experimental import pallas as pl
from jax.experimental.pallas import tpu as pltpu


# ----------------------------------------------------------------------------
# In-kernel math helpers
# ----------------------------------------------------------------------------
def _erf(z):
    """Abramowitz & Stegun 7.1.26 erf approximation (max abs err ~1.5e-7)."""
    a1, a2, a3, a4, a5 = (0.254829592, -0.284496736, 1.421413741,
                          -1.453152027, 1.061405429)
    p = 0.3275911
    az = jnp.abs(z)
    t = 1.0 / (1.0 + p * az)
    poly = t * (a1 + t * (a2 + t * (a3 + t * (a4 + t * a5))))
    e = 1.0 - poly * jnp.exp(-az * az)
    return jnp.where(z < 0, -e, e)


def _gelu(x):
    # Exact-form GELU (PyTorch nn.GELU default): 0.5*x*(1+erf(x/sqrt(2))).
    return 0.5 * x * (1.0 + _erf(x * 0.7071067811865476))


# ----------------------------------------------------------------------------
# Kernels
# ----------------------------------------------------------------------------
def _mlp_body(x_ref, w1_ref, b1_ref, w2_ref, b2_ref, mh_ref, mo_ref,
              o_ref, acc_ref, inv_keep):
    j = pl.program_id(1)

    @pl.when(j == 0)
    def _init():
        acc_ref[...] = jnp.zeros_like(acc_ref)

    # fc1 for this hidden tile: (bm, Din) @ (Din, bh) + b1, GELU, all in f32.
    h = jnp.dot(x_ref[...], w1_ref[...], preferred_element_type=jnp.float32)
    h = h + b1_ref[...].astype(jnp.float32)
    h = _gelu(h)
    if mh_ref is not None:                       # hidden dropout
        h = h * (mh_ref[...].astype(jnp.float32) * inv_keep)

    # fc2 partial product for this hidden tile, accumulated in f32 scratch.
    acc_ref[...] += jnp.dot(h.astype(w2_ref.dtype), w2_ref[...],
                            preferred_element_type=jnp.float32)

    @pl.when(j == pl.num_programs(1) - 1)
    def _finalize():
        out = acc_ref[...] + b2_ref[...].astype(jnp.float32)
        if mo_ref is not None:                   # output dropout
            out = out * (mo_ref[...].astype(jnp.float32) * inv_keep)
        o_ref[...] = out.astype(o_ref.dtype)


def _mlp_kernel(x_ref, w1_ref, b1_ref, w2_ref, b2_ref, o_ref, acc_ref):
    _mlp_body(x_ref, w1_ref, b1_ref, w2_ref, b2_ref, None, None,
              o_ref, acc_ref, 1.0)


def _mlp_dropout_kernel(x_ref, w1_ref, b1_ref, w2_ref, b2_ref, mh_ref, mo_ref,
                        o_ref, acc_ref, *, inv_keep):
    _mlp_body(x_ref, w1_ref, b1_ref, w2_ref, b2_ref, mh_ref, mo_ref,
              o_ref, acc_ref, inv_keep)


# ----------------------------------------------------------------------------
# Host-side wrapper
# ----------------------------------------------------------------------------
def _round_up(x, m):
    return ((x + m - 1) // m) * m


def _pad_to(a, axis, target):
    pad = target - a.shape[axis]
    if pad == 0:
        return a
    widths = [(0, 0)] * a.ndim
    widths[axis] = (0, pad)
    return jnp.pad(a, widths)


def _mlp_pallas(x2, w1, b1, w2, b2, *, mask_h=None, mask_o=None,
                inv_keep=1.0, block_m=256, block_h=512):
    """Fused MLP on a flat (M, D_in) activation. Returns (M, D_out)."""
    m, d_in = x2.shape
    hid = w1.shape[1]
    d_out = w2.shape[1]
    b1 = b1.reshape(1, hid)
    b2 = b2.reshape(1, d_out)

    # Tile sizes (row tile x hidden tile).  Feature dims stay full/last so
    # every block is lane-dense for real model widths; small test shapes use
    # full-dim blocks which are always legal.
    bm = min(block_m, m)
    bh = min(block_h, hid)
    mp = _round_up(m, bm)
    hp = _round_up(hid, bh)

    x2p = _pad_to(x2, 0, mp)              # padded rows are sliced off below
    w1p = _pad_to(w1, 1, hp)              # padded hidden cols: w=0, b=0
    b1p = _pad_to(b1, 1, hp)
    w2p = _pad_to(w2, 0, hp)              # padded hidden rows: w=0 -> no effect

    grid = (mp // bm, hp // bh)

    in_specs = [
        pl.BlockSpec((bm, d_in), lambda i, j: (i, 0)),     # x row tile
        pl.BlockSpec((d_in, bh), lambda i, j: (0, j)),     # W1 hidden tile
        pl.BlockSpec((1, bh), lambda i, j: (0, j)),        # b1 hidden tile
        pl.BlockSpec((bh, d_out), lambda i, j: (j, 0)),    # W2 hidden tile
        pl.BlockSpec((1, d_out), lambda i, j: (0, 0)),     # b2
    ]
    inputs = [x2p, w1p, b1p, w2p, b2]

    if mask_h is not None:
        mhp = _pad_to(_pad_to(mask_h, 0, mp), 1, hp)
        mop = _pad_to(mask_o, 0, mp)
        in_specs += [
            pl.BlockSpec((bm, bh), lambda i, j: (i, j)),    # hidden drop mask
            pl.BlockSpec((bm, d_out), lambda i, j: (i, 0)),  # output drop mask
        ]
        inputs += [mhp, mop]
        kernel = functools.partial(_mlp_dropout_kernel,
                                   inv_keep=float(inv_keep))
    else:
        kernel = _mlp_kernel

    out = pl.pallas_call(
        kernel,
        out_shape=jax.ShapeDtypeStruct((mp, d_out), x2.dtype),
        grid=grid,
        in_specs=in_specs,
        out_specs=pl.BlockSpec((bm, d_out), lambda i, j: (i, 0)),
        scratch_shapes=[pltpu.VMEM((bm, d_out), jnp.float32)],
        compiler_params=pltpu.CompilerParams(
            dimension_semantics=("parallel", "arbitrary")),
    )(*inputs)

    return out[:m]


def mlp_forward(x, w1, b1, w2, b2, *, drop=0.0, training=False, key=None,
                block_m=256, block_h=512):
    """MLP forward: gelu(x @ W1 + b1) (drop) @ W2 + b2 (drop)."""
    orig_shape = x.shape
    d_in = orig_shape[-1]
    m = 1
    for s in orig_shape[:-1]:
        m *= int(s)
    x2 = x.reshape(m, d_in)

    hid = w1.shape[1]
    d_out = w2.shape[1]

    mask_h = mask_o = None
    inv_keep = 1.0
    if drop > 0.0 and training:
        if key is None:
            raise ValueError("key is required when training with drop > 0")
        keep = 1.0 - float(drop)
        inv_keep = 1.0 / keep
        kh, ko = jax.random.split(key)
        # {0,1} Bernoulli(keep) masks; the 1/keep scale is applied in f32
        # inside the kernel (avoids bf16 quantization of the scale).
        mask_h = jax.random.bernoulli(kh, keep, (m, hid)).astype(x.dtype)
        mask_o = jax.random.bernoulli(ko, keep, (m, d_out)).astype(x.dtype)

    out2 = _mlp_pallas(x2, w1, b1, w2, b2, mask_h=mask_h, mask_o=mask_o,
                       inv_keep=inv_keep, block_m=block_m, block_h=block_h)
    return out2.reshape(orig_shape[:-1] + (d_out,))


class MLP:
    """Pallas/TPU version of the ViT MLP block (fc1 -> GELU -> drop -> fc2 -> drop)."""

    def __init__(self, in_features, hidden_features=None, out_features=None,
                 drop=0.0, *, key, dtype=jnp.float32):
        out_features = out_features or in_features
        hidden_features = hidden_features or in_features
        k1, k2, k3, k4 = jax.random.split(key, 4)
        lim1 = 1.0 / (in_features ** 0.5)
        lim2 = 1.0 / (hidden_features ** 0.5)
        self.w1 = jax.random.uniform(k1, (in_features, hidden_features), dtype,
                                     -lim1, lim1)
        self.b1 = jax.random.uniform(k2, (1, hidden_features), dtype,
                                     -lim1, lim1)
        self.w2 = jax.random.uniform(k3, (hidden_features, out_features), dtype,
                                     -lim2, lim2)
        self.b2 = jax.random.uniform(k4, (1, out_features), dtype, -lim2, lim2)
        self.drop = float(drop)
        self.training = True  # mirror torch default module mode

    def __call__(self, x, *, key=None):
        return mlp_forward(x, self.w1, self.b1, self.w2, self.b2,
                           drop=self.drop, training=self.training, key=key)


# ----------------------------------------------------------------------------
# Self-test
# ----------------------------------------------------------------------------
def _reference_mlp(x, w1, b1, w2, b2, mask_h=None, mask_o=None, keep=1.0):
    lead = x.shape[:-1]
    x2 = x.reshape(-1, x.shape[-1])
    h = jnp.dot(x2, w1) + b1.reshape(1, -1)
    h = jax.nn.gelu(h, approximate=False)
    if mask_h is not None:
        h = h * mask_h / keep
    o = jnp.dot(h, w2) + b2.reshape(1, -1)
    if mask_o is not None:
        o = o * mask_o / keep
    return o.reshape(lead + (w2.shape[1],))


if __name__ == "__main__":
    root = jax.random.PRNGKey(0)
    k_param, k_x, k_drop = jax.random.split(root, 3)

    B, N, D_IN, HID = 2, 8, 32, 64
    x = jax.random.normal(k_x, (B, N, D_IN), dtype=jnp.float32)

    # --- default module (drop=0.0), eval mode -------------------------------
    mlp = MLP(D_IN, hidden_features=HID, drop=0.0, key=k_param)
    mlp.training = False
    y = jax.block_until_ready(mlp(x))
    y_ref = _reference_mlp(x, mlp.w1, mlp.b1, mlp.w2, mlp.b2)
    assert y.shape == (B, N, D_IN) and y.dtype == x.dtype
    assert jnp.allclose(y, y_ref, atol=1e-2, rtol=1e-2)

    # --- multi-tile grid over rows (exercises the M-tiled pipeline) ---------
    y_tiled = jax.block_until_ready(
        mlp_forward(x, mlp.w1, mlp.b1, mlp.w2, mlp.b2, block_m=8, block_h=64))
    assert jnp.allclose(y_tiled, y_ref, atol=1e-2, rtol=1e-2)

    # --- multi-tile hidden axis (exercises the fc2 accumulator) -------------
    mlp_big = MLP(D_IN, hidden_features=256, drop=0.0, key=k_param)
    y_big = jax.block_until_ready(
        mlp_forward(x, mlp_big.w1, mlp_big.b1, mlp_big.w2, mlp_big.b2,
                    block_m=8, block_h=128))
    y_big_ref = _reference_mlp(x, mlp_big.w1, mlp_big.b1, mlp_big.w2,
                               mlp_big.b2)
    assert jnp.allclose(y_big, y_big_ref, atol=1e-2, rtol=1e-2)

    # --- training path with dropout ------------------------------------------
    drop = 0.25
    keep = 1.0 - drop
    mlp_d = MLP(D_IN, hidden_features=HID, drop=drop, key=k_param)
    mlp_d.training = True
    y_d = jax.block_until_ready(mlp_d(x, key=k_drop))

    kh, ko = jax.random.split(k_drop)  # reproduce the wrapper's masks exactly
    mask_h = jax.random.bernoulli(kh, keep, (B * N, HID)).astype(x.dtype)
    mask_o = jax.random.bernoulli(ko, keep, (B * N, D_IN)).astype(x.dtype)
    y_d_ref = _reference_mlp(x, mlp_d.w1, mlp_d.b1, mlp_d.w2, mlp_d.b2,
                             mask_h=mask_h, mask_o=mask_o, keep=keep)
    assert y_d.shape == x.shape and y_d.dtype == x.dtype
    assert jnp.allclose(y_d, y_d_ref, atol=1e-2, rtol=1e-2)

    print("KERNEL_OK")
</pallas_src>

<mosaic_0001>
module attributes {stable_mosaic.version = 11 : i64} {
  func.func @_mlp_kernel(%arg0: i32, %arg1: i32, %arg2: memref<16x32xf32, #tpu.memory_space<vmem>>, %arg3: memref<32x64xf32, #tpu.memory_space<vmem>>, %arg4: memref<1x64xf32, #tpu.memory_space<vmem>>, %arg5: memref<64x32xf32, #tpu.memory_space<vmem>>, %arg6: memref<1x32xf32, #tpu.memory_space<vmem>>, %arg7: memref<16x32xf32, #tpu.memory_space<vmem>>, %arg8: memref<16x32xf32, #tpu.memory_space<vmem>>) attributes {dimension_semantics = [#tpu.dimension_semantics<parallel>, #tpu.dimension_semantics<arbitrary>], iteration_bounds = array<i64: 1, 1>, scalar_prefetch = 0 : i64, scratch_operands = 1 : i64, tpu.core_type = #tpu.core_type<tc>, window_params = [{transform_indices = @transform_0, window_bounds = array<i64: 16, 32>}, {transform_indices = @transform_1, window_bounds = array<i64: 32, 64>}, {transform_indices = @transform_2, window_bounds = array<i64: 1, 64>}, {transform_indices = @transform_3, window_bounds = array<i64: 64, 32>}, {pipeline_mode = #tpu.pipeline_mode<synchronous>, transform_indices = @transform_4, window_bounds = array<i64: 1, 32>}, {transform_indices = @transform_5, window_bounds = array<i64: 16, 32>}]} {
    %c0_i32 = arith.constant 0 : i32
    %0 = arith.cmpi eq, %arg1, %c0_i32 : i32
    %1 = arith.extui %0 : i1 to i32
    %c0_i32_0 = arith.constant 0 : i32
    %2 = arith.cmpi ne, %1, %c0_i32_0 : i32
    scf.if %2 {
      %cst_30 = arith.constant 0.000000e+00 : f32
      %57 = vector.broadcast %cst_30 : f32 to vector<16x32xf32>
      %c0_31 = arith.constant 0 : index
      %c0_32 = arith.constant 0 : index
      %58 = vector.load %arg8[%c0_31, %c0_32] : memref<16x32xf32, #tpu.memory_space<vmem>>, vector<16x32xf32>
      tpu.vector_store %arg8[%c0_31, %c0_32], %57 {strides = array<i32>} : memref<16x32xf32, #tpu.memory_space<vmem>>, vector<16x32xf32>,
    } else {
    }
    %c0 = arith.constant 0 : index
    %c0_1 = arith.constant 0 : index
    %3 = vector.load %arg2[%c0, %c0_1] : memref<16x32xf32, #tpu.memory_space<vmem>>, vector<16x32xf32>
    %c0_2 = arith.constant 0 : index
    %c0_3 = arith.constant 0 : index
    %4 = vector.load %arg3[%c0_2, %c0_3] : memref<32x64xf32, #tpu.memory_space<vmem>>, vector<32x64xf32>
    %cst = arith.constant dense<0.000000e+00> : vector<16x64xf32>
    %5 = tpu.matmul %3, %4, %cst {dimension_numbers = #tpu.dot_dimension_numbers<[1], [0], [0], [1], [0, 0, 1, 1], [], []>} : vector<16x32xf32>, vector<32x64xf32>, vector<16x64xf32> -> vector<16x64xf32>
    %c0_4 = arith.constant 0 : index
    %c0_5 = arith.constant 0 : index
    %6 = vector.load %arg4[%c0_4, %c0_5] : memref<1x64xf32, #tpu.memory_space<vmem>>, vector<1x64xf32>
    %7 = vector.broadcast %6 : vector<1x64xf32> to vector<16x64xf32>
    %8 = arith.addf %5, %7 : vector<16x64xf32>
    %cst_6 = arith.constant 5.000000e-01 : f32
    %9 = vector.broadcast %cst_6 : f32 to vector<16x64xf32>
    %10 = arith.mulf %9, %8 : vector<16x64xf32>
    %cst_7 = arith.constant 0.707106769 : f32
    %11 = vector.broadcast %cst_7 : f32 to vector<16x64xf32>
    %12 = arith.mulf %8, %11 : vector<16x64xf32>
    %13 = math.absf %12 : vector<16x64xf32>
    %cst_8 = arith.constant 0.327591091 : f32
    %14 = vector.broadcast %cst_8 : f32 to vector<16x64xf32>
    %15 = arith.mulf %14, %13 : vector<16x64xf32>
    %cst_9 = arith.constant 1.000000e+00 : f32
    %16 = vector.broadcast %cst_9 : f32 to vector<16x64xf32>
    %17 = arith.addf %16, %15 : vector<16x64xf32>
    %cst_10 = arith.constant 1.000000e+00 : f32
    %18 = vector.broadcast %cst_10 : f32 to vector<16x64xf32>
    %19 = arith.divf %18, %17 : vector<16x64xf32>
    %cst_11 = arith.constant 1.06140542 : f32
    %20 = vector.broadcast %cst_11 : f32 to vector<16x64xf32>
    %21 = arith.mulf %19, %20 : vector<16x64xf32>
    %cst_12 = arith.constant -1.45315206 : f32
    %22 = vector.broadcast %cst_12 : f32 to vector<16x64xf32>
    %23 = arith.addf %22, %21 : vector<16x64xf32>
    %24 = arith.mulf %19, %23 : vector<16x64xf32>
    %cst_13 = arith.constant 1.42141378 : f32
    %25 = vector.broadcast %cst_13 : f32 to vector<16x64xf32>
    %26 = arith.addf %25, %24 : vector<16x64xf32>
    %27 = arith.mulf %19, %26 : vector<16x64xf32>
    %cst_14 = arith.constant -0.284496725 : f32
    %28 = vector.broadcast %cst_14 : f32 to vector<16x64xf32>
    %29 = arith.addf %28, %27 : vector<16x64xf32>
    %30 = arith.mulf %19, %29 : vector<16x64xf32>
    %cst_15 = arith.constant 0.254829586 : f32
    %31 = vector.broadcast %cst_15 : f32 to vector<16x64xf32>
    %32 = arith.addf %31, %30 : vector<16x64xf32>
    %33 = arith.mulf %19, %32 : vector<16x64xf32>
    %cst_16 = arith.constant 0.000000e+00 : f32
    %34 = vector.broadcast %cst_16 : f32 to vector<16x64xf32>
    %35 = arith.subf %34, %13 : vector<16x64xf32>
    %36 = arith.mulf %35, %13 : vector<16x64xf32>
    %37 = math.exp %36 : vector<16x64xf32>
    %38 = arith.mulf %33, %37 : vector<16x64xf32>
    %cst_17 = arith.constant 1.000000e+00 : f32
    %39 = vector.broadcast %cst_17 : f32 to vector<16x64xf32>
    %40 = arith.subf %39, %38 : vector<16x64xf32>
    %cst_18 = arith.constant 0.000000e+00 : f32
    %41 = vector.broadcast %cst_18 : f32 to vector<16x64xf32>
    %42 = arith.cmpf olt, %12, %41 : vector<16x64xf32>
    %cst_19 = arith.constant 0.000000e+00 : f32
    %43 = vector.broadcast %cst_19 : f32 to vector<16x64xf32>
    %44 = arith.subf %43, %40 : vector<16x64xf32>
    %45 = arith.select %42, %44, %40 : vector<16x64xi1>, vector<16x64xf32>
    %cst_20 = arith.constant 1.000000e+00 : f32
    %46 = vector.broadcast %cst_20 : f32 to vector<16x64xf32>
    %47 = arith.addf %46, %45 : vector<16x64xf32>
    %48 = arith.mulf %10, %47 : vector<16x64xf32>
    %c0_21 = arith.constant 0 : index
    %c0_22 = arith.constant 0 : index
    %49 = vector.load %arg8[%c0_21, %c0_22] : memref<16x32xf32, #tpu.memory_space<vmem>>, vector<16x32xf32>
    %c0_23 = arith.constant 0 : index
    %c0_24 = arith.constant 0 : index
    %50 = vector.load %arg5[%c0_23, %c0_24] : memref<64x32xf32, #tpu.memory_space<vmem>>, vector<64x32xf32>
    %cst_25 = arith.constant dense<0.000000e+00> : vector<16x32xf32>
    %51 = tpu.matmul %48, %50, %cst_25 {dimension_numbers = #tpu.dot_dimension_numbers<[1], [0], [0], [1], [0, 0, 1, 1], [], []>} : vector<16x64xf32>, vector<64x32xf32>, vector<16x32xf32> -> vector<16x32xf32>
    %52 = arith.addf %49, %51 : vector<16x32xf32>
    %c0_26 = arith.constant 0 : index
    %c0_27 = arith.constant 0 : index
    %53 = vector.load %arg8[%c0_26, %c0_27] : memref<16x32xf32, #tpu.memory_space<vmem>>, vector<16x32xf32>
    tpu.vector_store %arg8[%c0_26, %c0_27], %52 {strides = array<i32>} : memref<16x32xf32, #tpu.memory_space<vmem>>, vector<16x32xf32>,
    %c0_i32_28 = arith.constant 0 : i32
    %54 = arith.cmpi eq, %arg1, %c0_i32_28 : i32
    %55 = arith.extui %54 : i1 to i32
    %c0_i32_29 = arith.constant 0 : i32
    %56 = arith.cmpi ne, %55, %c0_i32_29 : i32
    scf.if %56 {
      %c0_30 = arith.constant 0 : index
      %c0_31 = arith.constant 0 : index
      %57 = vector.load %arg8[%c0_30, %c0_31] : memref<16x32xf32, #tpu.memory_space<vmem>>, vector<16x32xf32>
      %c0_32 = arith.constant 0 : index
      %c0_33 = arith.constant 0 : index
      %58 = vector.load %arg6[%c0_32, %c0_33] : memref<1x32xf32, #tpu.memory_space<vmem>>, vector<1x32xf32>
      %59 = vector.broadcast %58 : vector<1x32xf32> to vector<16x32xf32>
      %60 = arith.addf %57, %59 : vector<16x32xf32>
      %c0_34 = arith.constant 0 : index
      %c0_35 = arith.constant 0 : index
      %61 = vector.load %arg7[%c0_34, %c0_35] : memref<16x32xf32, #tpu.memory_space<vmem>>, vector<16x32xf32>
      tpu.vector_store %arg7[%c0_34, %c0_35], %60 {strides = array<i32>} : memref<16x32xf32, #tpu.memory_space<vmem>>, vector<16x32xf32>,
    } else {
    }
    return
  }
  func.func @transform_0(%arg0: i32, %arg1: i32) -> (i32, i32) {
    %c0_i32 = arith.constant 0 : i32
    %c0_i32_0 = arith.constant 0 : i32
    return %arg0, %c0_i32 : i32, i32
  }
  func.func @transform_1(%arg0: i32, %arg1: i32) -> (i32, i32) {
    %c0_i32 = arith.constant 0 : i32
    %c0_i32_0 = arith.constant 0 : i32
    return %c0_i32, %arg1 : i32, i32
  }
  func.func @transform_2(%arg0: i32, %arg1: i32) -> (i32, i32) {
    %c0_i32 = arith.constant 0 : i32
    %c0_i32_0 = arith.constant 0 : i32
    return %c0_i32, %arg1 : i32, i32
  }
  func.func @transform_3(%arg0: i32, %arg1: i32) -> (i32, i32) {
    %c0_i32 = arith.constant 0 : i32
    %c0_i32_0 = arith.constant 0 : i32
    return %arg1, %c0_i32 : i32, i32
  }
  func.func @transform_4(%arg0: i32, %arg1: i32) -> (i32, i32) {
    %c0_i32 = arith.constant 0 : i32
    %c0_i32_0 = arith.constant 0 : i32
    %c0_i32_1 = arith.constant 0 : i32
    return %c0_i32, %c0_i32_0 : i32, i32
  }
  func.func @transform_5(%arg0: i32, %arg1: i32) -> (i32, i32) {
    %c0_i32 = arith.constant 0 : i32
    %c0_i32_0 = arith.constant 0 : i32
    return %arg0, %c0_i32 : i32, i32
  }
}

</mosaic_0001>

<llo_original>
// kernel: tpu_custom_call.1
$region0: #{tpu_custom_call.1}
  #allocation0 [shape = 'u32[]', space=smem, size = 0x4, offset = 0x4, fixed_abs, tag = 'smem constant byte address 0x4 - core index']
  #allocation1 [shape = 'u32[144,128]{1,0:T(1,128)}', space=vmem, size = 0x12000, scoped, tag = 'internal scratch']
  #allocation2 [shape = 'f32[16,32]{1,0:T(8,128)}', space=vmem, size = 0x2000, scoped, tag = 'scratch operand']
  %s0 = inlined_call_operand.vmem [shape: f32[16,32], index: 0, kind: input, shape index: {}]
  %s1 = inlined_call_operand.vmem [shape: f32[32,64], index: 1, kind: input, shape index: {}]
  %s2 = inlined_call_operand.vmem [shape: f32[1,64], index: 2, kind: input, shape index: {}]
  %s3 = inlined_call_operand.vmem [shape: f32[64,32], index: 3, kind: input, shape index: {}]
  %s4 = inlined_call_operand.vmem [shape: f32[1,32], index: 4, kind: input, shape index: {}]
  %s5 = inlined_call_operand.hbm [shape: f32[16,32], index: 5, kind: output, shape index: {}]
  %s6 = sld [smem:[#allocation0]]
  $region38: #{tpu_custom_call.1} parent=0
    _
  %s8 = ssub.s32 1, %s6
  %s9 = scalar_select 0, %s8, %s6
  $region1: #{tpu_custom_call.1} parent=0
    #allocation3 [shape = 'u8[8192]{0}', space=vmem, size = 0x2000, scoped, tag = 'output window, operand 0, single buffered']
    #allocation4 [shape = 's32[1]{0}', space=sflag, size = 0x4, scoped, tag = 'scoped memory for tpu_custom_call.1']
    %10 = vsyncpa [#allocation4], 0
    // Predicated region
    $region2: #{tpu_custom_call.1} parent=1 // pred_check
      _
    $region3: #{tpu_custom_call.1} parent=1 // pred_check_branch
      %12 = sbr.rel (0) target = $region5
    $region4: #{tpu_custom_call.1} parent=1 // pred_region
      _
    $region5: #{tpu_custom_call.1} parent=1 // pred_fallthru
      _
    // Predicated region
    $region6: #{tpu_custom_call.1} parent=1 // pred_check
      _
    $region7: #{tpu_custom_call.1} parent=1 // pred_check_branch
      %14 = sbr.rel (0) target = $region9
    $region8: #{tpu_custom_call.1} parent=1 // pred_region
      _
    $region9: #{tpu_custom_call.1} parent=1 // pred_fallthru
      _
    // Predicated region
    $region10: #{tpu_custom_call.1} parent=1 // pred_check
      _
    $region11: #{tpu_custom_call.1} parent=1 // pred_check_branch
      %16 = sbr.rel (0) target = $region13
    $region12: #{tpu_custom_call.1} parent=1 // pred_region
      _
    $region13: #{tpu_custom_call.1} parent=1 // pred_fallthru
      _
    // Predicated region
    $region14: #{tpu_custom_call.1} parent=1 // pred_check
      _
    $region15: #{tpu_custom_call.1} parent=1 // pred_check_branch
      %18 = sbr.rel (0) target = $region17
    $region16: #{tpu_custom_call.1} parent=1 // pred_region
      _
    $region17: #{tpu_custom_call.1} parent=1 // pred_fallthru
      _
    // Predicated region
    $region18: #{tpu_custom_call.1} parent=1 // pred_check
      _
    $region19: #{tpu_custom_call.1} parent=1 // pred_check_branch
      %20 = sbr.rel (0) target = $region21
    $region20: #{tpu_custom_call.1} parent=1 // pred_region
      _
    $region21: #{tpu_custom_call.1} parent=1 // pred_fallthru
      _
    %p21 = scmp.eq.s32.totalorder 0, 0
    // Predicated region
    $region22: #{tpu_custom_call.1} parent=1 // pred_check
      %p22 = pneg %p21
    $region23: #{tpu_custom_call.1} parent=1 // pred_check_branch
      %24 = sbr.rel (%p22) target = $region25
    $region24: #{tpu_custom_call.1} parent=1 // pred_region
      %vm25 = vcmask 261120
      %26 = vst.msk [vmem:[#allocation2] sm:$0xff] %vm25, 0.0
      %27 = vst.msk [vmem:[#allocation2 + $0x8] sm:$0xff] %vm25, 0.0
    $region25: #{tpu_custom_call.1} parent=1 // pred_fallthru
      _
    %v28 = vld [vmem:[%s0] sm:$0xff]
    %v29 = vld [vmem:[%s0 + $0x8] sm:$0xff]
    %v30 = vld [vmem:[%s1] sm:$0xff]
    %v31 = vld [vmem:[%s1 + $0x8] sm:$0xff]
    %v32 = vld [vmem:[%s1 + $0x10] sm:$0xff]
    %v33 = vld [vmem:[%s1 + $0x18] sm:$0xff]
    %v34 = vld [vmem:[%s2] sm:$0x1]
    %v36 = vlaneseq
    %v37 = vshrl.u32 %v36, 7
    %v38 = vsub.s32 0, %v37
    %v39 = vrot.slane %v34, %v38
    %vm41 = vcmask 261120
    %v43 = vsel %vm41, %v28, 0
    %v46 = vsel %vm41, %v29, 0
    %48 = vmatprep.subr.mxu0 0.0
    %49 = vmatpush1.msra.mxu0 %v30
    %50 = vmatprep.subr.mxu0 0.0
    %51 = vmatpush1.msra.mxu0 %v31
    %52 = vmatprep.subr.mxu0 0.0
    %53 = vmatpush1.msra.mxu0 %v32
    %54 = vmatprep.subr.mxu0 0.0
    %55 = vmatpush1.msra.mxu0 %v33
    %56 = vmatprep.subr.mxu0 0.0
    %57 = vmatpush1.msra.mxu0 0.0
    %58 = vmatprep.subr.mxu0 0.0
    %59 = vmatpush1.msra.mxu0 0.0
    %60 = vmatprep.subr.mxu0 0.0
    %61 = vmatpush1.msra.mxu0 0.0
    %62 = vmatprep.subr.mxu0 0.0
    %63 = vmatpush1.msra.mxu0 0.0
    %64 = vmatprep.subr.mxu0 0.0
    %65 = vmatpush1.msra.mxu0 0.0
    %66 = vmatprep.subr.mxu0 0.0
    %67 = vmatpush1.msra.mxu0 0.0
    %68 = vmatprep.subr.mxu0 0.0
    %69 = vmatpush1.msra.mxu0 0.0
    %70 = vmatprep.subr.mxu0 0.0
    %71 = vmatpush1.msra.mxu0 0.0
    %72 = vmatprep.subr.mxu0 0.0
    %73 = vmatpush1.msra.mxu0 0.0
    %74 = vmatprep.subr.mxu0 0.0
    %75 = vmatpush1.msra.mxu0 0.0
    %76 = vmatprep.subr.mxu0 0.0
    %77 = vmatpush1.msra.mxu0 0.0
    %78 = vmatprep.subr.mxu0 0.0
    %79 = vmatpush1.msra.mxu0 0.0
    %80 = vmatprep.subr.mxu0 0.0
    %81 = vmatpush1.msra.mxu0 0.0
    %82 = vmatprep.subr.mxu0 0.0
    %83 = vmatpush1.msra.mxu0 0.0
    %84 = vmatprep.subr.mxu0 0.0
    %85 = vmatpush1.msra.mxu0 0.0
    %86 = vmatprep.subr.mxu0 0.0
    %87 = vmatpush1.msra.mxu0 0.0
    %88 = vmatprep.subr.mxu0 0.0
    %89 = vmatpush1.msra.mxu0 0.0
    %90 = vmatprep.subr.mxu0 0.0
    %91 = vmatpush1.msra.mxu0 0.0
    %92 = vmatprep.subr.mxu0 0.0
    %93 = vmatpush1.msra.mxu0 0.0
    %94 = vmatprep.subr.mxu0 0.0
    %95 = vmatpush1.msra.mxu0 0.0
    %96 = vmatprep.subr.mxu0 0.0
    %97 = vmatpush1.msra.mxu0 0.0
    %98 = vmatprep.subr.mxu0 0.0
    %99 = vmatpush1.msra.mxu0 0.0
    %100 = vmatprep.subr.mxu0 0.0
    %101 = vmatpush1.msra.mxu0 0.0
    %102 = vmatprep.subr.mxu0 0.0
    %103 = vmatpush1.msra.mxu0 0.0
    %104 = vmatprep.subr.mxu0 0.0
    %105 = vmatpush1.msra.mxu0 0.0
    %106 = vmatprep.subr.mxu0 0.0
    %107 = vmatpush1.msra.mxu0 0.0
    %108 = vmatprep.subr.mxu0 0.0
    %109 = vmatpush1.msra.mxu0 0.0
    %110 = vmatprep.subr.mxu0 0.0
    %111 = vmatpush1.msra.mxu0 0.0
    %112 = vmatprep.mubr.f32.mxu0 0.0
    %113 = vmatmul.mubr.f32.gmra.mrb[0].mxu0 %v43
    %v114 = vpop.f32.mrb[0].mxu0
    %v115 = vadd.f32 %v39, %v114
    %v116 = vpop.f32.mrb[0].mxu0
    %117 = vmatprep.mubr.f32.mxu0 0.0
    %118 = vmatmul.mubr.f32.gmra.mrb[0].mxu0 %v46
    %v119 = vpop.f32.mrb[0].mxu0
    %v120 = vadd.f32 %v39, %v119
    %v121 = vpop.f32.mrb[0].mxu0
    %122 = vdwg.mxu0
    %v123 = vmul.f32 %v115, 0.5
    %v124 = vmul.f32 %v120, 0.5
    %v125 = vmul.f32 %v115, 0.70710677
    %v126 = vmul.f32 %v120, 0.70710677
    %v127 = vand.u32 2147483647, %v125
    %v128 = vand.u32 2147483647, %v126
    %v129 = vmul.f32 %v127, 0.3275911
    %v130 = vmul.f32 %v128, 0.3275911
    %v131 = vadd.f32 %v129, 1.0
    %v132 = vadd.f32 %v130, 1.0
    %v133 = vrcp.pop %v131
    %v134 = vmul.f32 1.0, %v133
    %v135 = vrcp.pop %v132
    %v136 = vmul.f32 1.0, %v135
    %v137 = vmul.f32 %v134, 1.0614054
    %v138 = vmul.f32 %v136, 1.0614054
    %v139 = vadd.f32 %v137, -1.4531521
    %v140 = vadd.f32 %v138, -1.4531521
    %v141 = vmul.f32 %v134, %v139
    %v142 = vmul.f32 %v136, %v140
    %v143 = vadd.f32 %v141, 1.4214138
    %v144 = vadd.f32 %v142, 1.4214138
    %v145 = vmul.f32 %v134, %v143
    %v146 = vmul.f32 %v136, %v144
    %v147 = vadd.f32 %v145, -0.28449672
    %v148 = vadd.f32 %v146, -0.28449672
    %v149 = vmul.f32 %v134, %v147
    %v150 = vmul.f32 %v136, %v148
    %v151 = vadd.f32 %v149, 0.2548296
    %v152 = vadd.f32 %v150, 0.2548296
    %v153 = vmul.f32 %v134, %v151
    %v154 = vmul.f32 %v136, %v152
    %v155 = vsub.f32 0.0, %v127
    %v156 = vsub.f32 0.0, %v128
    %v157 = vmul.f32 %v155, %v127
    %v158 = vmul.f32 %v156, %v128
    %v159 = vmul.f32 %v157, 1.442695
    %v160 = vpow.pop %v159
    %v161 = vmul.f32 %v158, 1.442695
    %v162 = vpow.pop %v161
    %v163 = vmul.f32 %v153, %v160
    %v164 = vmul.f32 %v154, %v162
    %v165 = vsub.f32 1.0, %v163
    %v166 = vsub.f32 1.0, %v164
    %vm167 = vcmp.lt.f32.partialorder %v125, 0.0
    %vm168 = vcmp.lt.f32.partialorder %v126, 0.0
    %v169 = vsub.f32 0.0, %v165
    %v170 = vsub.f32 0.0, %v166
    %v171 = vsel %vm167, %v169, %v165
    %v172 = vsel %vm168, %v170, %v166
    %v173 = vadd.f32 %v171, 1.0
    %v174 = vadd.f32 %v172, 1.0
    %v175 = vmul.f32 %v123, %v173
    %v176 = vmul.f32 %v124, %v174
    %v177 = vld [vmem:[#allocation2] sm:$0xff]
    %v178 = vld [vmem:[#allocation2 + $0x8] sm:$0xff]
    %v179 = vld [vmem:[%s3] sm:$0xff]
    %v180 = vld [vmem:[%s3 + $0x8] sm:$0xff]
    %v181 = vld [vmem:[%s3 + $0x10] sm:$0xff]
    %v182 = vld [vmem:[%s3 + $0x18] sm:$0xff]
    %v183 = vld [vmem:[%s3 + $0x20] sm:$0xff]
    %v184 = vld [vmem:[%s3 + $0x28] sm:$0xff]
    %v185 = vld [vmem:[%s3 + $0x30] sm:$0xff]
    %v186 = vld [vmem:[%s3 + $0x38] sm:$0xff]
    %vm187 = vcmask 523264
    %v189 = vsel %vm187, %v175, 0
    %v192 = vsel %vm187, %v176, 0
    %194 = vmatprep.subr.mxu0 0.0
    %195 = vmatpush1.msra.mxu0 %v179
    %196 = vmatprep.subr.mxu0 0.0
    %197 = vmatpush1.msra.mxu0 %v180
    %198 = vmatprep.subr.mxu0 0.0
    %199 = vmatpush1.msra.mxu0 %v181
    %200 = vmatprep.subr.mxu0 0.0
    %201 = vmatpush1.msra.mxu0 %v182
    %202 = vmatprep.subr.mxu0 0.0
    %203 = vmatpush1.msra.mxu0 %v183
    %204 = vmatprep.subr.mxu0 0.0
    %205 = vmatpush1.msra.mxu0 %v184
    %206 = vmatprep.subr.mxu0 0.0
    %207 = vmatpush1.msra.mxu0 %v185
    %208 = vmatprep.subr.mxu0 0.0
    %209 = vmatpush1.msra.mxu0 %v186
    %210 = vmatprep.subr.mxu0 0.0
    %211 = vmatpush1.msra.mxu0 0.0
    %212 = vmatprep.subr.mxu0 0.0
    %213 = vmatpush1.msra.mxu0 0.0
    %214 = vmatprep.subr.mxu0 0.0
    %215 = vmatpush1.msra.mxu0 0.0
    %216 = vmatprep.subr.mxu0 0.0
    %217 = vmatpush1.msra.mxu0 0.0
    %218 = vmatprep.subr.mxu0 0.0
    %219 = vmatpush1.msra.mxu0 0.0
    %220 = vmatprep.subr.mxu0 0.0
    %221 = vmatpush1.msra.mxu0 0.0
    %222 = vmatprep.subr.mxu0 0.0
    %223 = vmatpush1.msra.mxu0 0.0
    %224 = vmatprep.subr.mxu0 0.0
    %225 = vmatpush1.msra.mxu0 0.0
    %226 = vmatprep.subr.mxu0 0.0
    %227 = vmatpush1.msra.mxu0 0.0
    %228 = vmatprep.subr.mxu0 0.0
    %229 = vmatpush1.msra.mxu0 0.0
    %230 = vmatprep.subr.mxu0 0.0
    %231 = vmatpush1.msra.mxu0 0.0
    %232 = vmatprep.subr.mxu0 0.0
    %233 = vmatpush1.msra.mxu0 0.0
    %234 = vmatprep.subr.mxu0 0.0
    %235 = vmatpush1.msra.mxu0 0.0
    %236 = vmatprep.subr.mxu0 0.0
    %237 = vmatpush1.msra.mxu0 0.0
    %238 = vmatprep.subr.mxu0 0.0
    %239 = vmatpush1.msra.mxu0 0.0
    %240 = vmatprep.subr.mxu0 0.0
    %241 = vmatpush1.msra.mxu0 0.0
    %242 = vmatprep.subr.mxu0 0.0
    %243 = vmatpush1.msra.mxu0 0.0
    %244 = vmatprep.subr.mxu0 0.0
    %245 = vmatpush1.msra.mxu0 0.0
    %246 = vmatprep.subr.mxu0 0.0
    %247 = vmatpush1.msra.mxu0 0.0
    %248 = vmatprep.subr.mxu0 0.0
    %249 = vmatpush1.msra.mxu0 0.0
    %250 = vmatprep.subr.mxu0 0.0
    %251 = vmatpush1.msra.mxu0 0.0
    %252 = vmatprep.subr.mxu0 0.0
    %253 = vmatpush1.msra.mxu0 0.0
    %254 = vmatprep.subr.mxu0 0.0
    %255 = vmatpush1.msra.mxu0 0.0
    %256 = vmatprep.subr.mxu0 0.0
    %257 = vmatpush1.msra.mxu0 0.0
    %258 = vmatprep.mubr.f32.mxu0 0.0
    %259 = vmatmul.mubr.f32.gmra.mrb[0].mxu0 %v189
    %v260 = vpop.f32.mrb[0].mxu0
    %v261 = vadd.f32 0.0, %v260
    %v262 = vpop.f32.mrb[0].mxu0
    %263 = vmatprep.mubr.f32.mxu0 0.0
    %264 = vmatmul.mubr.f32.gmra.mrb[0].mxu0 %v192
    %v265 = vpop.f32.mrb[0].mxu0
    %v266 = vadd.f32 0.0, %v265
    %v267 = vpop.f32.mrb[0].mxu0
    %268 = vdwg.mxu0
    %v269 = vadd.f32 %v177, %v261
    %v270 = vadd.f32 %v178, %v266
    %271 = vst.msk [vmem:[#allocation2] sm:$0xff] %vm41, %v269
    %272 = vst.msk [vmem:[#allocation2 + $0x8] sm:$0xff] %vm41, %v270
    // Predicated region
    $region26: #{tpu_custom_call.1} parent=1 // pred_check
      %p273 = pneg %p21
    $region27: #{tpu_custom_call.1} parent=1 // pred_check_branch
      %275 = sbr.rel (%p273) target = $region29
    $region28: #{tpu_custom_call.1} parent=1 // pred_region
      %v276 = vld [vmem:[#allocation2] sm:$0xff]
      %v277 = vld [vmem:[#allocation2 + $0x8] sm:$0xff]
      %v278 = vld [vmem:[%s4] sm:$0x1]
      %v280 = vlaneseq
      %v281 = vshrl.u32 %v280, 7
      %v282 = vsub.s32 0, %v281
      %v283 = vrot.slane %v278, %v282
      %v285 = vadd.f32 %v276, %v283
      %v286 = vadd.f32 %v277, %v283
      %287 = vst.msk [vmem:[#allocation3] sm:$0xff] %vm41, %v285
      %288 = vst.msk [vmem:[#allocation3 + $0x8] sm:$0xff] %vm41, %v286
    $region29: #{tpu_custom_call.1} parent=1 // pred_fallthru
      _
    // Predicated region
    $region30: #{tpu_custom_call.1} parent=1 // pred_check
      _
    $region31: #{tpu_custom_call.1} parent=1 // pred_check_branch
      %290 = sbr.rel (0) target = $region33
    $region32: #{tpu_custom_call.1} parent=1 // pred_region
      %s292 = ssub.s32 256, 256
      %293 = vsyncadd [#allocation4], %s292
      %s294 = sshll.u32 [#allocation3], 4
      %s295 = int_to_ptr.vmem [resolvable:$true] %s294
      %300 = dma.vmem_to_hbm [thread:$0]  %s295, 256, %s5, [#allocation4], 128, 128, 8
    $region33: #{tpu_custom_call.1} parent=1 // pred_fallthru
      _
    // Predicated region
    $region34: #{tpu_custom_call.1} parent=1 // pred_check
      _
    $region35: #{tpu_custom_call.1} parent=1 // pred_check_branch
      %302 = sbr.rel (0) target = $region37
    $region36: #{tpu_custom_call.1} parent=1 // pred_region
      %303 = dma.done [#allocation4], 256
    $region37: #{tpu_custom_call.1} parent=1 // pred_fallthru
      _
    %304 = vsyncpa [#allocation4], 1

</llo_original>
